<compile_context>
chip_gen: v6e
topology: v6e:2x2x1
jax: 0.10.0
libtpu: 0.0.40
codegen_flags: <defaults>
</compile_context>

<pallas_src>
import functools
import math

import jax
import jax.numpy as jnp
from jax.experimental import pallas as pl
from jax.experimental.pallas import tpu as pltpu

_LANE = 128
_TARGET_BLOCK_BYTES = 2 * 1024 * 1024  # ~2 MiB per grid step


def _leaky_relu_kernel(x_ref, o_ref, *, negative_slope):
    x = x_ref[...]
    slope = jnp.asarray(negative_slope, dtype=x.dtype)
    o_ref[...] = jnp.where(x < 0, x * slope, x)


@functools.partial(jax.jit, static_argnames=("negative_slope", "donate_input"))
def leaky_relu(x: jax.Array, negative_slope: float = 0.01,
               donate_input: bool = False) -> jax.Array:
    orig_shape = x.shape
    dtype = x.dtype
    n = math.prod(orig_shape)
    if n == 0:
        return x

    flat = x.reshape(-1)

    # Prefer a wide lane-dense slab width that divides n exactly (no pad copy).
    width = None
    for cand in (8 * _LANE, 4 * _LANE, 2 * _LANE, _LANE):
        if n % cand == 0:
            width = cand
            break

    padded_n = n
    if width is None:
        # Rare fallback: zero-pad the tail (safe: LeakyReLU(0) == 0).
        width = 8 * _LANE
        padded_n = pl.cdiv(n, width) * width
        flat = jnp.pad(flat, (0, padded_n - n))

    rows = padded_n // width
    slab = flat.reshape(rows, width)

    # Block-row count: ~2 MiB blocks, aligned to the packed sublane count.
    itemsize = jnp.dtype(dtype).itemsize
    pack = max(8, 32 // itemsize)  # 8 (32-bit), 16 (bf16), 32 (int8/fp8)
    target_rows = max(pack,
                      (_TARGET_BLOCK_BYTES // (width * itemsize)) // pack * pack)
    block_rows = rows if rows <= target_rows else target_rows
    grid = (pl.cdiv(rows, block_rows),)

    kernel = functools.partial(_leaky_relu_kernel, negative_slope=negative_slope)

    extra_kwargs = {}
    if donate_input:
        extra_kwargs["input_output_aliases"] = {0: 0}

    out = pl.pallas_call(
        kernel,
        out_shape=jax.ShapeDtypeStruct((rows, width), dtype),
        grid=grid,
        in_specs=[pl.BlockSpec((block_rows, width), lambda i: (i, 0))],
        out_specs=pl.BlockSpec((block_rows, width), lambda i: (i, 0)),
        compiler_params=pltpu.CompilerParams(
            dimension_semantics=("parallel",),
        ),
        **extra_kwargs,
    )(slab)

    out_flat = out.reshape(-1)
    if padded_n != n:
        out_flat = out_flat[:n]
    return out_flat.reshape(orig_shape)


if __name__ == "__main__":
    key = jax.random.PRNGKey(0)
    k1, k2 = jax.random.split(key)

    # NCHW input consistent with a GAN/VAE conv stack (lane-aligned path).
    x = jax.random.normal(k1, (2, 4, 16, 16), dtype=jnp.float32)
    y_ref = jnp.where(x < 0, x * 0.01, x)
    y = jax.block_until_ready(leaky_relu(x, negative_slope=0.01))
    assert y.shape == x.shape and y.dtype == x.dtype
    assert jnp.allclose(y, y_ref, atol=1e-6), "mismatch vs reference (aligned path)"

    # Ragged shape from the original spec (3, 100) -> exercises the pad fallback.
    x2 = jax.random.normal(k2, (3, 100), dtype=jnp.float32)
    y2_ref = jnp.where(x2 < 0, x2 * 0.01, x2)
    y2 = jax.block_until_ready(leaky_relu(x2, negative_slope=0.01))
    assert y2.shape == x2.shape and y2.dtype == x2.dtype
    assert jnp.allclose(y2, y2_ref, atol=1e-6), "mismatch vs reference (padded path)"

    print("KERNEL_OK")
</pallas_src>

<mosaic_0001>
module attributes {stable_mosaic.version = 11 : i64} {
  func.func @_leaky_relu_kernel(%arg0: i32, %arg1: memref<2x1024xf32, #tpu.memory_space<vmem>>, %arg2: memref<2x1024xf32, #tpu.memory_space<vmem>>) attributes {dimension_semantics = [#tpu.dimension_semantics<parallel>], iteration_bounds = array<i64: 1>, scalar_prefetch = 0 : i64, scratch_operands = 0 : i64, tpu.core_type = #tpu.core_type<tc>, window_params = [{transform_indices = @transform_0, window_bounds = array<i64: 2, 1024>}, {transform_indices = @transform_1, window_bounds = array<i64: 2, 1024>}]} {
    %c0 = arith.constant 0 : index
    %c0_0 = arith.constant 0 : index
    %0 = vector.load %arg1[%c0, %c0_0] : memref<2x1024xf32, #tpu.memory_space<vmem>>, vector<2x1024xf32>
    %cst = arith.constant 0.000000e+00 : f32
    %1 = vector.broadcast %cst : f32 to vector<2x1024xf32>
    %2 = arith.cmpf olt, %0, %1 : vector<2x1024xf32>
    %cst_1 = arith.constant 0.00999999977 : f32
    %3 = vector.broadcast %cst_1 : f32 to vector<2x1024xf32>
    %4 = arith.mulf %0, %3 : vector<2x1024xf32>
    %5 = arith.select %2, %4, %0 : vector<2x1024xi1>, vector<2x1024xf32>
    %c0_2 = arith.constant 0 : index
    %c0_3 = arith.constant 0 : index
    %6 = vector.load %arg2[%c0_2, %c0_3] : memref<2x1024xf32, #tpu.memory_space<vmem>>, vector<2x1024xf32>
    tpu.vector_store %arg2[%c0_2, %c0_3], %5 {strides = array<i32>} : memref<2x1024xf32, #tpu.memory_space<vmem>>, vector<2x1024xf32>,
    return
  }
  func.func @transform_0(%arg0: i32) -> (i32, i32) {
    %c0_i32 = arith.constant 0 : i32
    %c0_i32_0 = arith.constant 0 : i32
    return %arg0, %c0_i32 : i32, i32
  }
  func.func @transform_1(%arg0: i32) -> (i32, i32) {
    %c0_i32 = arith.constant 0 : i32
    %c0_i32_0 = arith.constant 0 : i32
    return %arg0, %c0_i32 : i32, i32
  }
}

</mosaic_0001>

<llo_original>
// kernel: leaky_relu.1
$region0: #{leaky_relu.1}
  #allocation0 [shape = 'u32[]', space=smem, size = 0x4, offset = 0x4, fixed_abs, tag = 'smem constant byte address 0x4 - core index']
  #allocation1 [shape = 'u32[144,128]{1,0:T(1,128)}', space=vmem, size = 0x12000, scoped, tag = 'internal scratch']
  %s0 = inlined_call_operand.vmem [shape: f32[2,1024], index: 0, kind: input, shape index: {}]
  %s1 = inlined_call_operand.vmem [shape: f32[2,1024], index: 1, kind: output, shape index: {}]
  %s2 = sld [smem:[#allocation0]]
  $region14: #{leaky_relu.1} parent=0
    _
  %s4 = ssub.s32 1, %s2
  %s5 = scalar_select 0, %s4, %s2
  // Predicated region
  $region2: #{leaky_relu.1} parent=0 // pred_check
    _
  $region3: #{leaky_relu.1} parent=0 // pred_check_branch
    %7 = sbr.rel (0) target = $region5
  $region4: #{leaky_relu.1} parent=0 // pred_region
    _
  $region5: #{leaky_relu.1} parent=0 // pred_fallthru
    _
  %v8 = vld [vmem:[%s0] sm:$0xff]
  %v9 = vld [vmem:[%s0 + $0x8] sm:$0xff]
  %vm10 = vcmp.lt.f32.partialorder %v8, 0.0
  %vm11 = vcmp.lt.f32.partialorder %v9, 0.0
  %v12 = vmul.f32 %v8, 0.01
  %v13 = vmul.f32 %v9, 0.01
  %v14 = vsel %vm10, %v12, %v8
  %v15 = vsel %vm11, %v13, %v9
  %16 = vst [vmem:[%s1] sm:$0xff] %v14
  %17 = vst [vmem:[%s1 + $0x8] sm:$0xff] %v15
  // Predicated region
  $region6: #{leaky_relu.1} parent=0 // pred_check
    _
  $region7: #{leaky_relu.1} parent=0 // pred_check_branch
    %19 = sbr.rel (0) target = $region9
  $region8: #{leaky_relu.1} parent=0 // pred_region
    _
  $region9: #{leaky_relu.1} parent=0 // pred_fallthru
    _
  // Predicated region
  $region10: #{leaky_relu.1} parent=0 // pred_check
    _
  $region11: #{leaky_relu.1} parent=0 // pred_check_branch
    %21 = sbr.rel (0) target = $region13
  $region12: #{leaky_relu.1} parent=0 // pred_region
    _
  $region13: #{leaky_relu.1} parent=0 // pred_fallthru
    _

</llo_original>
